<compile_context>
chip_gen: v7x
topology: tpu7x:2x2x1
jax: 0.10.0
libtpu: 0.0.40
codegen_flags: <defaults>
</compile_context>

<pallas_src>
import functools

import jax
import jax.numpy as jnp
from jax.experimental import pallas as pl
from jax.experimental.pallas import tpu as pltpu


def _bottleneck_kernel(
    x_ref,                      # (1, C_in, TL)  f32
    w1_ref, b1_ref,             # (C_b, C_in)  bf16, (C_b, 1)  f32   (BN1 folded)
    w2_ref, b2_ref,             # (C_b, C_b)   bf16, (C_b, 1)  f32   (BN2 folded)
    w3_ref, b3_ref,             # (C_out, C_b) bf16, (C_out, 1) f32  (BN3 folded)
    sew1t_ref, seb1_ref,        # (C_out, C_r) f32 (= W_se1^T), (1, C_r) f32
    sew2_ref, seb2_ref,         # (C_out, C_r) f32 (= W_se2),   (C_out, 1) f32
    o_ref,                      # (1, C_out, TL) f32
    pooled_ref,                 # VMEM scratch (C_out, 1) f32 -- running sum over L
    se_ref,                     # VMEM scratch (C_out, 1) f32 -- SE gate
    *, inv_l,
):
    phase = pl.program_id(1)
    ltile = pl.program_id(2)

    x = x_ref[0]                                     # (C_in, TL) f32
    xb = x.astype(jnp.bfloat16)

    # conv1 (1x1, bias-free) + bn1 (folded) + relu
    h = jnp.dot(w1_ref[...], xb, preferred_element_type=jnp.float32)
    h = jnp.maximum(h + b1_ref[...], 0.0)
    # conv2 (1x1, stride=1) + bn2 + relu
    h = jnp.dot(w2_ref[...], h.astype(jnp.bfloat16),
                preferred_element_type=jnp.float32)
    h = jnp.maximum(h + b2_ref[...], 0.0)
    # conv3 (1x1) + bn3
    h = jnp.dot(w3_ref[...], h.astype(jnp.bfloat16),
                preferred_element_type=jnp.float32)
    h = h + b3_ref[...]                              # (C_out, TL) f32

    @pl.when(phase == 0)
    def _accumulate_pool():
        part = jnp.sum(h, axis=1, keepdims=True)     # (C_out, 1) lane reduction

        @pl.when(ltile == 0)
        def _():
            pooled_ref[...] = part

        @pl.when(ltile != 0)
        def _():
            pooled_ref[...] = pooled_ref[...] + part

    @pl.when(phase == 1)
    def _apply():
        @pl.when(ltile == 0)
        def _():
            # SE gate: AdaptiveAvgPool1d(1) -> 1x1 conv -> relu -> 1x1 conv ->
            # sigmoid.  Tiny (C_out x C_r) work, done once per batch element,
            # expressed as broadcast-multiply + reduce (no M=1/N=1 matmuls).
            pooled = pooled_ref[...] * inv_l                               # (C_out, 1)
            z = jnp.sum(sew1t_ref[...] * pooled, axis=0, keepdims=True)    # (1, C_r)
            z = jnp.maximum(z + seb1_ref[...], 0.0)
            s = jnp.sum(sew2_ref[...] * z, axis=1, keepdims=True)          # (C_out, 1)
            se_ref[...] = jax.nn.sigmoid(s + seb2_ref[...])

        # SE scale, dropout(eval)=identity, residual add (identity), relu.
        out = jnp.maximum(h * se_ref[...] + x, 0.0)
        o_ref[0] = out.astype(o_ref.dtype)


def bottleneck_block_1d(x_ncl, params, *, l_tile=512):
    """x_ncl: (N, C_in, L) float32 in PyTorch NCL layout. Returns (N, C_out, L)."""
    (w1, b1, w2, b2, w3, b3, sew1t, seb1, sew2, seb2) = params
    N, C_in, L = x_ncl.shape
    C_b = w1.shape[0]
    C_out = w3.shape[0]
    C_r = sew1t.shape[1]
    assert C_in == C_out, (
        "residual add requires in_channels == out_channels "
        "(stride=1, downsample=None path)")
    # TODO(synk): stride>1 / downsample paths and training-mode BN / stochastic
    #             dropout are not implemented; eval-mode forward only.

    # Lane-dense L tiling: tile must be a multiple of 128 that divides L,
    # otherwise fall back to the full (untiled) L axis.
    if L % 128 == 0 and l_tile % 128 == 0 and L % l_tile == 0:
        tl = min(l_tile, L)
    else:
        tl = L   # TODO(synk): pad/mask a ragged last L tile instead of falling back
    n_ltiles = L // tl

    const2d = lambda shape: pl.BlockSpec(shape, lambda b, p, l: (0, 0))

    # Advisory cost hint for XLA scheduling around the custom call.
    flops = 2 * 2 * N * L * (C_in * C_b + C_b * C_b + C_b * C_out)
    bytes_accessed = (2 * int(x_ncl.size) + N * C_out * L) * 4 + sum(
        int(p.size) * p.dtype.itemsize for p in params)
    cost = pl.CostEstimate(flops=int(flops), transcendentals=int(N * C_out),
                           bytes_accessed=int(bytes_accessed))

    kernel = functools.partial(_bottleneck_kernel, inv_l=1.0 / L)

    out = pl.pallas_call(
        kernel,
        out_shape=jax.ShapeDtypeStruct((N, C_out, L), x_ncl.dtype),
        grid_spec=pltpu.PrefetchScalarGridSpec(
            num_scalar_prefetch=0,
            # (batch, phase, L-tile): phase 0 accumulates the SE pooled sum,
            # phase 1 applies the SE gate + residual and writes the output.
            grid=(N, 2, n_ltiles),
            in_specs=[
                pl.BlockSpec((1, C_in, tl), lambda b, p, l: (b, 0, l)),
                const2d((C_b, C_in)), const2d((C_b, 1)),
                const2d((C_b, C_b)), const2d((C_b, 1)),
                const2d((C_out, C_b)), const2d((C_out, 1)),
                const2d((C_out, C_r)), const2d((1, C_r)),
                const2d((C_out, C_r)), const2d((C_out, 1)),
            ],
            # Nothing is written during phase 0; pinning the block index at
            # (b, 0, 0) while p == 0 avoids spurious HBM write-backs of
            # untouched output buffers.  Phase 1 visits (b, 0, l) normally.
            out_specs=pl.BlockSpec((1, C_out, tl), lambda b, p, l: (b, 0, l * p)),
            scratch_shapes=[
                pltpu.VMEM((C_out, 1), jnp.float32),   # pooled sum over L
                pltpu.VMEM((C_out, 1), jnp.float32),   # SE gate
            ],
        ),
        compiler_params=pltpu.CompilerParams(
            dimension_semantics=("parallel", "arbitrary", "arbitrary"),
            vmem_limit_bytes=32 * 1024 * 1024,
        ),
        cost_estimate=cost,
    )(x_ncl, w1, b1, w2, b2, w3, b3, sew1t, seb1, sew2, seb2)
    return out


def _fold_bn(w, gamma, beta, mean, var, eps=1e-5):
    """Fold eval-mode BatchNorm1d into a preceding bias-free 1x1 conv.

    w: (C_out, C_in) conv weight (PyTorch weight[:, :, 0]).
    Returns (bf16 folded weight, f32 bias of shape (C_out, 1)).
    """
    scale = gamma / jnp.sqrt(var + eps)                      # (C_out,)
    w_folded = (w * scale[:, None]).astype(jnp.bfloat16)     # MXU path in bf16
    bias = (beta - mean * scale)[:, None].astype(jnp.float32)
    return w_folded, bias


def make_params(key, c_in, c_b, c_out, reduction_ratio=0.25):
    c_r = int(c_out * reduction_ratio)
    ks = jax.random.split(key, 10)

    def w(k, o, i):
        return jax.random.normal(k, (o, i), jnp.float32) / jnp.sqrt(i)

    def bn(k, c):
        k1, k2, k3, k4 = jax.random.split(k, 4)
        gamma = 1.0 + 0.1 * jax.random.normal(k1, (c,), jnp.float32)
        beta = 0.1 * jax.random.normal(k2, (c,), jnp.float32)
        mean = 0.1 * jax.random.normal(k3, (c,), jnp.float32)
        var = jnp.abs(1.0 + 0.1 * jax.random.normal(k4, (c,), jnp.float32))
        return gamma, beta, mean, var

    w1f, b1 = _fold_bn(w(ks[0], c_b, c_in), *bn(ks[1], c_b))
    w2f, b2 = _fold_bn(w(ks[2], c_b, c_b), *bn(ks[3], c_b))
    w3f, b3 = _fold_bn(w(ks[4], c_out, c_b), *bn(ks[5], c_out))

    # SE: conv(c_out->c_r) / relu / conv(c_r->c_out) / sigmoid.  W_se1 is stored
    # transposed (c_out, c_r) and W_se2 as-is (c_out, c_r), so both SE layers
    # become broadcast-multiply + reduce inside the kernel.
    sew1t = w(ks[6], c_r, c_out).T                            # (c_out, c_r)
    seb1 = 0.1 * jax.random.normal(ks[7], (1, c_r), jnp.float32)
    sew2 = w(ks[8], c_out, c_r)                               # (c_out, c_r)
    seb2 = 0.1 * jax.random.normal(ks[9], (c_out, 1), jnp.float32)

    return (w1f, b1, w2f, b2, w3f, b3, sew1t, seb1, sew2, seb2)


def reference(x_ncl, params):
    """Pure-JAX eval-mode reference with the same numerics (bf16 matmuls)."""
    (w1, b1, w2, b2, w3, b3, sew1t, seb1, sew2, seb2) = params

    def conv(w, h):     # w: (O, I) bf16, h: (N, I, L) f32
        return jnp.einsum("oi,nil->nol", w, h.astype(jnp.bfloat16),
                          preferred_element_type=jnp.float32)

    x = x_ncl
    h = jnp.maximum(conv(w1, x) + b1[None], 0.0)
    h = jnp.maximum(conv(w2, h) + b2[None], 0.0)
    h = conv(w3, h) + b3[None]
    pooled = jnp.mean(h, axis=2, keepdims=True)                          # (N, C_out, 1)
    z = jnp.maximum(jnp.sum(sew1t[None] * pooled, axis=1, keepdims=True)
                    + seb1[None], 0.0)                                   # (N, 1, C_r)
    s = jax.nn.sigmoid(jnp.sum(sew2[None] * z, axis=2, keepdims=True)
                       + seb2[None])                                     # (N, C_out, 1)
    return jnp.maximum(h * s + x, 0.0)


if __name__ == "__main__":
    # Small shapes; C_in == C_out so the identity residual path applies,
    # L is a multiple of 128 so output stores are lane-dense.
    N, C_IN, C_B, C_OUT, L = 2, 32, 16, 32, 256

    key = jax.random.PRNGKey(0)
    kx, kp = jax.random.split(key)
    x = jax.random.normal(kx, (N, C_IN, L), jnp.float32)     # PyTorch NCL layout
    params = make_params(kp, C_IN, C_B, C_OUT)

    out = bottleneck_block_1d(x, params, l_tile=128)
    out = jax.block_until_ready(out)

    ref = reference(x, params)
    assert out.shape == (N, C_OUT, L)
    err = float(jnp.max(jnp.abs(out - ref)))
    assert jnp.allclose(out, ref, atol=2e-3, rtol=2e-3), f"mismatch vs reference: {err}"

    print("KERNEL_OK")
</pallas_src>

<mosaic_0001>
module attributes {stable_mosaic.version = 11 : i64} {
  func.func @_bottleneck_kernel(%arg0: i32, %arg1: i32, %arg2: i32, %arg3: memref<1x32x128xf32, #tpu.memory_space<vmem>>, %arg4: memref<16x32xbf16, #tpu.memory_space<vmem>>, %arg5: memref<16x1xf32, #tpu.memory_space<vmem>>, %arg6: memref<16x16xbf16, #tpu.memory_space<vmem>>, %arg7: memref<16x1xf32, #tpu.memory_space<vmem>>, %arg8: memref<32x16xbf16, #tpu.memory_space<vmem>>, %arg9: memref<32x1xf32, #tpu.memory_space<vmem>>, %arg10: memref<32x8xf32, #tpu.memory_space<vmem>>, %arg11: memref<1x8xf32, #tpu.memory_space<vmem>>, %arg12: memref<32x8xf32, #tpu.memory_space<vmem>>, %arg13: memref<32x1xf32, #tpu.memory_space<vmem>>, %arg14: memref<1x32x128xf32, #tpu.memory_space<vmem>>, %arg15: memref<32x1xf32, #tpu.memory_space<vmem>>, %arg16: memref<32x1xf32, #tpu.memory_space<vmem>>) attributes {dimension_semantics = [#tpu.dimension_semantics<parallel>, #tpu.dimension_semantics<arbitrary>, #tpu.dimension_semantics<arbitrary>], iteration_bounds = array<i64: 2, 2, 2>, scalar_prefetch = 0 : i64, scratch_operands = 2 : i64, tpu.core_type = #tpu.core_type<tc>, window_params = [{transform_indices = @transform_0, window_bounds = array<i64: 1, 32, 128>}, {pipeline_mode = #tpu.pipeline_mode<synchronous>, transform_indices = @transform_1, window_bounds = array<i64: 16, 32>}, {pipeline_mode = #tpu.pipeline_mode<synchronous>, transform_indices = @transform_2, window_bounds = array<i64: 16, 1>}, {pipeline_mode = #tpu.pipeline_mode<synchronous>, transform_indices = @transform_3, window_bounds = array<i64: 16, 16>}, {pipeline_mode = #tpu.pipeline_mode<synchronous>, transform_indices = @transform_4, window_bounds = array<i64: 16, 1>}, {pipeline_mode = #tpu.pipeline_mode<synchronous>, transform_indices = @transform_5, window_bounds = array<i64: 32, 16>}, {pipeline_mode = #tpu.pipeline_mode<synchronous>, transform_indices = @transform_6, window_bounds = array<i64: 32, 1>}, {pipeline_mode = #tpu.pipeline_mode<synchronous>, transform_indices = @transform_7, window_bounds = array<i64: 32, 8>}, {pipeline_mode = #tpu.pipeline_mode<synchronous>, transform_indices = @transform_8, window_bounds = array<i64: 1, 8>}, {pipeline_mode = #tpu.pipeline_mode<synchronous>, transform_indices = @transform_9, window_bounds = array<i64: 32, 8>}, {pipeline_mode = #tpu.pipeline_mode<synchronous>, transform_indices = @transform_10, window_bounds = array<i64: 32, 1>}, {transform_indices = @transform_11, window_bounds = array<i64: 1, 32, 128>}]} {
    %c0 = arith.constant 0 : index
    %c0_0 = arith.constant 0 : index
    %c0_1 = arith.constant 0 : index
    %0 = vector.load %arg3[%c0, %c0_0, %c0_1] : memref<1x32x128xf32, #tpu.memory_space<vmem>>, vector<1x32x128xf32>
    %1 = vector.shape_cast %0 : vector<1x32x128xf32> to vector<32x128xf32>
    %2 = arith.truncf %1 : vector<32x128xf32> to vector<32x128xbf16>
    %c0_2 = arith.constant 0 : index
    %c0_3 = arith.constant 0 : index
    %3 = vector.load %arg4[%c0_2, %c0_3] : memref<16x32xbf16, #tpu.memory_space<vmem>>, vector<16x32xbf16>
    %cst = arith.constant dense<0.000000e+00> : vector<16x128xf32>
    %4 = tpu.matmul %3, %2, %cst {dimension_numbers = #tpu.dot_dimension_numbers<[1], [0], [0], [1], [0, 0, 1, 1], [], []>} : vector<16x32xbf16>, vector<32x128xbf16>, vector<16x128xf32> -> vector<16x128xf32>
    %c0_4 = arith.constant 0 : index
    %c0_5 = arith.constant 0 : index
    %5 = vector.load %arg5[%c0_4, %c0_5] : memref<16x1xf32, #tpu.memory_space<vmem>>, vector<16x1xf32>
    %6 = vector.broadcast %5 : vector<16x1xf32> to vector<16x128xf32>
    %7 = arith.addf %4, %6 : vector<16x128xf32>
    %cst_6 = arith.constant 0.000000e+00 : f32
    %8 = vector.broadcast %cst_6 : f32 to vector<16x128xf32>
    %9 = arith.maximumf %7, %8 : vector<16x128xf32>
    %c0_7 = arith.constant 0 : index
    %c0_8 = arith.constant 0 : index
    %10 = vector.load %arg6[%c0_7, %c0_8] : memref<16x16xbf16, #tpu.memory_space<vmem>>, vector<16x16xbf16>
    %11 = arith.truncf %9 : vector<16x128xf32> to vector<16x128xbf16>
    %cst_9 = arith.constant dense<0.000000e+00> : vector<16x128xf32>
    %12 = tpu.matmul %10, %11, %cst_9 {dimension_numbers = #tpu.dot_dimension_numbers<[1], [0], [0], [1], [0, 0, 1, 1], [], []>} : vector<16x16xbf16>, vector<16x128xbf16>, vector<16x128xf32> -> vector<16x128xf32>
    %c0_10 = arith.constant 0 : index
    %c0_11 = arith.constant 0 : index
    %13 = vector.load %arg7[%c0_10, %c0_11] : memref<16x1xf32, #tpu.memory_space<vmem>>, vector<16x1xf32>
    %14 = vector.broadcast %13 : vector<16x1xf32> to vector<16x128xf32>
    %15 = arith.addf %12, %14 : vector<16x128xf32>
    %cst_12 = arith.constant 0.000000e+00 : f32
    %16 = vector.broadcast %cst_12 : f32 to vector<16x128xf32>
    %17 = arith.maximumf %15, %16 : vector<16x128xf32>
    %c0_13 = arith.constant 0 : index
    %c0_14 = arith.constant 0 : index
    %18 = vector.load %arg8[%c0_13, %c0_14] : memref<32x16xbf16, #tpu.memory_space<vmem>>, vector<32x16xbf16>
    %19 = arith.truncf %17 : vector<16x128xf32> to vector<16x128xbf16>
    %cst_15 = arith.constant dense<0.000000e+00> : vector<32x128xf32>
    %20 = tpu.matmul %18, %19, %cst_15 {dimension_numbers = #tpu.dot_dimension_numbers<[1], [0], [0], [1], [0, 0, 1, 1], [], []>} : vector<32x16xbf16>, vector<16x128xbf16>, vector<32x128xf32> -> vector<32x128xf32>
    %c0_16 = arith.constant 0 : index
    %c0_17 = arith.constant 0 : index
    %21 = vector.load %arg9[%c0_16, %c0_17] : memref<32x1xf32, #tpu.memory_space<vmem>>, vector<32x1xf32>
    %22 = vector.broadcast %21 : vector<32x1xf32> to vector<32x128xf32>
    %23 = arith.addf %20, %22 : vector<32x128xf32>
    %c0_i32 = arith.constant 0 : i32
    %24 = arith.cmpi eq, %arg1, %c0_i32 : i32
    %25 = arith.extui %24 : i1 to i32
    %c0_i32_18 = arith.constant 0 : i32
    %26 = arith.cmpi ne, %25, %c0_i32_18 : i32
    scf.if %26 {
      %cst_20 = arith.constant dense<0.000000e+00> : vector<32xf32>
      %30 = vector.multi_reduction <add>, %23, %cst_20 [1] : vector<32x128xf32> to vector<32xf32>
      %31 = vector.shape_cast %30 : vector<32xf32> to vector<32x1xf32>
      %c0_i32_21 = arith.constant 0 : i32
      %32 = arith.cmpi eq, %arg2, %c0_i32_21 : i32
      %33 = arith.extui %32 : i1 to i32
      %c0_i32_22 = arith.constant 0 : i32
      %34 = arith.cmpi ne, %33, %c0_i32_22 : i32
      scf.if %34 {
        %c0_25 = arith.constant 0 : index
        %c0_26 = arith.constant 0 : index
        %38 = vector.load %arg15[%c0_25, %c0_26] : memref<32x1xf32, #tpu.memory_space<vmem>>, vector<32x1xf32>
        tpu.vector_store %arg15[%c0_25, %c0_26], %31 {strides = array<i32>} : memref<32x1xf32, #tpu.memory_space<vmem>>, vector<32x1xf32>,
      } else {
      }
      %c0_i32_23 = arith.constant 0 : i32
      %35 = arith.cmpi ne, %arg2, %c0_i32_23 : i32
      %36 = arith.extui %35 : i1 to i32
      %c0_i32_24 = arith.constant 0 : i32
      %37 = arith.cmpi ne, %36, %c0_i32_24 : i32
      scf.if %37 {
        %c0_25 = arith.constant 0 : index
        %c0_26 = arith.constant 0 : index
        %38 = vector.load %arg15[%c0_25, %c0_26] : memref<32x1xf32, #tpu.memory_space<vmem>>, vector<32x1xf32>
        %39 = arith.addf %38, %31 : vector<32x1xf32>
        %c0_27 = arith.constant 0 : index
        %c0_28 = arith.constant 0 : index
        %40 = vector.load %arg15[%c0_27, %c0_28] : memref<32x1xf32, #tpu.memory_space<vmem>>, vector<32x1xf32>
        tpu.vector_store %arg15[%c0_27, %c0_28], %39 {strides = array<i32>} : memref<32x1xf32, #tpu.memory_space<vmem>>, vector<32x1xf32>,
      } else {
      }
    } else {
    }
    %c1_i32 = arith.constant 1 : i32
    %27 = arith.cmpi eq, %arg1, %c1_i32 : i32
    %28 = arith.extui %27 : i1 to i32
    %c0_i32_19 = arith.constant 0 : i32
    %29 = arith.cmpi ne, %28, %c0_i32_19 : i32
    scf.if %29 {
      %c0_i32_20 = arith.constant 0 : i32
      %30 = arith.cmpi eq, %arg2, %c0_i32_20 : i32
      %31 = arith.extui %30 : i1 to i32
      %c0_i32_21 = arith.constant 0 : i32
      %32 = arith.cmpi ne, %31, %c0_i32_21 : i32
      scf.if %32 {
        %c0_28 = arith.constant 0 : index
        %c0_29 = arith.constant 0 : index
        %42 = vector.load %arg15[%c0_28, %c0_29] : memref<32x1xf32, #tpu.memory_space<vmem>>, vector<32x1xf32>
        %cst_30 = arith.constant 3.906250e-03 : f32
        %43 = vector.broadcast %cst_30 : f32 to vector<32x1xf32>
        %44 = arith.mulf %42, %43 : vector<32x1xf32>
        %c0_31 = arith.constant 0 : index
        %c0_32 = arith.constant 0 : index
        %45 = vector.load %arg10[%c0_31, %c0_32] : memref<32x8xf32, #tpu.memory_space<vmem>>, vector<32x8xf32>
        %46 = vector.broadcast %44 : vector<32x1xf32> to vector<32x8xf32>
        %47 = arith.mulf %45, %46 : vector<32x8xf32>
        %cst_33 = arith.constant dense<0.000000e+00> : vector<8xf32>
        %48 = vector.multi_reduction <add>, %47, %cst_33 [0] : vector<32x8xf32> to vector<8xf32>
        %49 = vector.shape_cast %48 : vector<8xf32> to vector<1x8xf32>
        %c0_34 = arith.constant 0 : index
        %c0_35 = arith.constant 0 : index
        %50 = vector.load %arg11[%c0_34, %c0_35] : memref<1x8xf32, #tpu.memory_space<vmem>>, vector<1x8xf32>
        %51 = arith.addf %49, %50 : vector<1x8xf32>
        %cst_36 = arith.constant 0.000000e+00 : f32
        %52 = vector.broadcast %cst_36 : f32 to vector<1x8xf32>
        %53 = arith.maximumf %51, %52 : vector<1x8xf32>
        %c0_37 = arith.constant 0 : index
        %c0_38 = arith.constant 0 : index
        %54 = vector.load %arg12[%c0_37, %c0_38] : memref<32x8xf32, #tpu.memory_space<vmem>>, vector<32x8xf32>
        %55 = vector.broadcast %53 : vector<1x8xf32> to vector<32x8xf32>
        %56 = arith.mulf %54, %55 : vector<32x8xf32>
        %cst_39 = arith.constant dense<0.000000e+00> : vector<32xf32>
        %57 = vector.multi_reduction <add>, %56, %cst_39 [1] : vector<32x8xf32> to vector<32xf32>
        %58 = vector.shape_cast %57 : vector<32xf32> to vector<32x1xf32>
        %c0_40 = arith.constant 0 : index
        %c0_41 = arith.constant 0 : index
        %59 = vector.load %arg13[%c0_40, %c0_41] : memref<32x1xf32, #tpu.memory_space<vmem>>, vector<32x1xf32>
        %60 = arith.addf %58, %59 : vector<32x1xf32>
        %61 = arith.negf %60 : vector<32x1xf32>
        %62 = math.exp %61 : vector<32x1xf32>
        %cst_42 = arith.constant 1.000000e+00 : f32
        %63 = vector.broadcast %cst_42 : f32 to vector<32x1xf32>
        %64 = arith.addf %63, %62 : vector<32x1xf32>
        %65 = arith.divf %63, %64 : vector<32x1xf32>
        %c0_43 = arith.constant 0 : index
        %c0_44 = arith.constant 0 : index
        %66 = vector.load %arg16[%c0_43, %c0_44] : memref<32x1xf32, #tpu.memory_space<vmem>>, vector<32x1xf32>
        tpu.vector_store %arg16[%c0_43, %c0_44], %65 {strides = array<i32>} : memref<32x1xf32, #tpu.memory_space<vmem>>, vector<32x1xf32>,
      } else {
      }
      %c0_22 = arith.constant 0 : index
      %c0_23 = arith.constant 0 : index
      %33 = vector.load %arg16[%c0_22, %c0_23] : memref<32x1xf32, #tpu.memory_space<vmem>>, vector<32x1xf32>
      %34 = vector.broadcast %33 : vector<32x1xf32> to vector<32x128xf32>
      %35 = arith.mulf %23, %34 : vector<32x128xf32>
      %36 = arith.addf %35, %1 : vector<32x128xf32>
      %cst_24 = arith.constant 0.000000e+00 : f32
      %37 = vector.broadcast %cst_24 : f32 to vector<32x128xf32>
      %38 = arith.maximumf %36, %37 : vector<32x128xf32>
      %c0_25 = arith.constant 0 : index
      %c0_26 = arith.constant 0 : index
      %c0_27 = arith.constant 0 : index
      %39 = vector.load %arg14[%c0_25, %c0_26, %c0_27] : memref<1x32x128xf32, #tpu.memory_space<vmem>>, vector<1x32x128xf32>
      %40 = vector.shape_cast %39 : vector<1x32x128xf32> to vector<32x128xf32>
      %41 = vector.shape_cast %38 : vector<32x128xf32> to vector<1x32x128xf32>
      tpu.vector_store %arg14[%c0_25, %c0_26, %c0_27], %41 {strides = array<i32>} : memref<1x32x128xf32, #tpu.memory_space<vmem>>, vector<1x32x128xf32>,
    } else {
    }
    return
  }
  func.func @transform_0(%arg0: i32, %arg1: i32, %arg2: i32) -> (i32, i32, i32) {
    %c0_i32 = arith.constant 0 : i32
    %c0_i32_0 = arith.constant 0 : i32
    return %arg0, %c0_i32, %arg2 : i32, i32, i32
  }
  func.func @transform_1(%arg0: i32, %arg1: i32, %arg2: i32) -> (i32, i32) {
    %c0_i32 = arith.constant 0 : i32
    %c0_i32_0 = arith.constant 0 : i32
    %c0_i32_1 = arith.constant 0 : i32
    return %c0_i32, %c0_i32_0 : i32, i32
  }
  func.func @transform_2(%arg0: i32, %arg1: i32, %arg2: i32) -> (i32, i32) {
    %c0_i32 = arith.constant 0 : i32
    %c0_i32_0 = arith.constant 0 : i32
    %c0_i32_1 = arith.constant 0 : i32
    return %c0_i32, %c0_i32_0 : i32, i32
  }
  func.func @transform_3(%arg0: i32, %arg1: i32, %arg2: i32) -> (i32, i32) {
    %c0_i32 = arith.constant 0 : i32
    %c0_i32_0 = arith.constant 0 : i32
    %c0_i32_1 = arith.constant 0 : i32
    return %c0_i32, %c0_i32_0 : i32, i32
  }
  func.func @transform_4(%arg0: i32, %arg1: i32, %arg2: i32) -> (i32, i32) {
    %c0_i32 = arith.constant 0 : i32
    %c0_i32_0 = arith.constant 0 : i32
    %c0_i32_1 = arith.constant 0 : i32
    return %c0_i32, %c0_i32_0 : i32, i32
  }
  func.func @transform_5(%arg0: i32, %arg1: i32, %arg2: i32) -> (i32, i32) {
    %c0_i32 = arith.constant 0 : i32
    %c0_i32_0 = arith.constant 0 : i32
    %c0_i32_1 = arith.constant 0 : i32
    return %c0_i32, %c0_i32_0 : i32, i32
  }
  func.func @transform_6(%arg0: i32, %arg1: i32, %arg2: i32) -> (i32, i32) {
    %c0_i32 = arith.constant 0 : i32
    %c0_i32_0 = arith.constant 0 : i32
    %c0_i32_1 = arith.constant 0 : i32
    return %c0_i32, %c0_i32_0 : i32, i32
  }
  func.func @transform_7(%arg0: i32, %arg1: i32, %arg2: i32) -> (i32, i32) {
    %c0_i32 = arith.constant 0 : i32
    %c0_i32_0 = arith.constant 0 : i32
    %c0_i32_1 = arith.constant 0 : i32
    return %c0_i32, %c0_i32_0 : i32, i32
  }
  func.func @transform_8(%arg0: i32, %arg1: i32, %arg2: i32) -> (i32, i32) {
    %c0_i32 = arith.constant 0 : i32
    %c0_i32_0 = arith.constant 0 : i32
    %c0_i32_1 = arith.constant 0 : i32
    return %c0_i32, %c0_i32_0 : i32, i32
  }
  func.func @transform_9(%arg0: i32, %arg1: i32, %arg2: i32) -> (i32, i32) {
    %c0_i32 = arith.constant 0 : i32
    %c0_i32_0 = arith.constant 0 : i32
    %c0_i32_1 = arith.constant 0 : i32
    return %c0_i32, %c0_i32_0 : i32, i32
  }
  func.func @transform_10(%arg0: i32, %arg1: i32, %arg2: i32) -> (i32, i32) {
    %c0_i32 = arith.constant 0 : i32
    %c0_i32_0 = arith.constant 0 : i32
    %c0_i32_1 = arith.constant 0 : i32
    return %c0_i32, %c0_i32_0 : i32, i32
  }
  func.func @transform_11(%arg0: i32, %arg1: i32, %arg2: i32) -> (i32, i32, i32) {
    %0 = arith.muli %arg2, %arg1 : i32
    %c0_i32 = arith.constant 0 : i32
    %c0_i32_0 = arith.constant 0 : i32
    return %arg0, %c0_i32, %0 : i32, i32, i32
  }
}

</mosaic_0001>

<llo_original>
// kernel: tpu_custom_call.1
$region0: #{tpu_custom_call.1}
  #allocation0 [shape = 'u32[]', space=smem, size = 0x4, offset = 0x4, fixed_abs, tag = 'smem constant byte address 0x4 - core index']
  #allocation1 [shape = 'u32[144,128]{1,0:T(1,128)}', space=vmem, size = 0x12000, scoped, tag = 'internal scratch']
  #allocation2 [shape = 'f32[32,1]{1,0:T(8,128)}', space=vmem, size = 0x4000, scoped, tag = 'scratch operand']
  #allocation3 [shape = 'f32[32,1]{1,0:T(8,128)}', space=vmem, size = 0x4000, scoped, tag = 'scratch operand']
  %s0 = inlined_call_operand.vmem [shape: f32[2,32,256], index: 0, kind: input, shape index: {}]
  %s1 = inlined_call_operand.vmem [shape: bf16[16,32], index: 1, kind: input, shape index: {}]
  %s2 = inlined_call_operand.vmem [shape: f32[16,1], index: 2, kind: input, shape index: {}]
  %s3 = inlined_call_operand.vmem [shape: bf16[16,16], index: 3, kind: input, shape index: {}]
  %s4 = inlined_call_operand.vmem [shape: f32[16,1], index: 4, kind: input, shape index: {}]
  %s5 = inlined_call_operand.vmem [shape: bf16[32,16], index: 5, kind: input, shape index: {}]
  %s6 = inlined_call_operand.vmem [shape: f32[32,1], index: 6, kind: input, shape index: {}]
  %s7 = inlined_call_operand.vmem [shape: f32[32,8], index: 7, kind: input, shape index: {}]
  %s8 = inlined_call_operand.vmem [shape: f32[1,8], index: 8, kind: input, shape index: {}]
  %s9 = inlined_call_operand.vmem [shape: f32[32,8], index: 9, kind: input, shape index: {}]
  %s10 = inlined_call_operand.vmem [shape: f32[32,1], index: 10, kind: input, shape index: {}]
  %s11 = inlined_call_operand.hbm [shape: f32[2,32,256], index: 11, kind: output, shape index: {}]
  %s12 = sld [smem:[#allocation0]]
  $region135: #{tpu_custom_call.1} parent=0
    _
  %s14 = ssub.s32 1, %s12
  %s15 = scalar_select 0, %s14, %s12
  $region1: #{tpu_custom_call.1} parent=0
    #allocation4 [shape = 'u8[32768]{0}', space=vmem, size = 0x8000, scoped, tag = 'input window, operand 0']
    #allocation5 [shape = 'u8[32768]{0}', space=vmem, size = 0x8000, scoped, tag = 'output window, operand 0']
    #allocation6 [shape = 's32[2]{0}', space=sflag, size = 0x8, scoped, tag = 'scoped memory for tpu_custom_call.1']
    %16 = vsyncpa [#allocation6], 0
    %s17 = scalar_lea.sflag [#allocation6], 1
    %18 = vsyncpa %s17, 0
    loop: start=0, step=1, limit=10
    $region2: #{tpu_custom_call.1} parent=1 // loop_pre_header
      _
    $region3: #{tpu_custom_call.1} parent=1 // loop_header
      %s20 = sphi 0, %s24
      %p21 = scmp.ge.s32.totalorder %s20, 10
      %s27 = sphi 0, %s46
      %s28 = sphi 0, %s42
      %s29 = sphi 0, %s38
      %s30 = sphi 0, %s27
      %s31 = sphi 0, %s28
      %s32 = sphi 0, %s29
      %s33 = sphi 0, %s30
      %s34 = sphi 0, %s31
      %s35 = sphi 0, %s32
      %s51 = sphi 0, %s53
      %s54 = sphi 0, %s51
      %s55 = sphi 0, %s54
      %s71 = sphi 0, %s55
      %s75 = sphi 0, %s75
      %s77 = sphi 0, %s75
      %s78 = sphi 0, %s77
      %s92 = sphi 0, %s78
      %s96 = sphi 0, %s96
      %s98 = sphi 0, %s96
      %s99 = sphi 0, %s98
      %s113 = sphi 0, %s99
      %s117 = sphi 0, %s117
      %s119 = sphi 0, %s117
      %s120 = sphi 0, %s119
      %s134 = sphi 0, %s120
      %s138 = sphi 0, %s138
      %s140 = sphi 0, %s138
      %s141 = sphi 0, %s140
      %s155 = sphi 0, %s141
      %s159 = sphi 0, %s159
      %s161 = sphi 0, %s159
      %s162 = sphi 0, %s161
      %s176 = sphi 0, %s162
      %s180 = sphi 0, %s180
      %s182 = sphi 0, %s180
      %s183 = sphi 0, %s182
      %s197 = sphi 0, %s183
      %s201 = sphi 0, %s201
      %s203 = sphi 0, %s201
      %s204 = sphi 0, %s203
      %s218 = sphi 0, %s204
      %s222 = sphi 0, %s222
      %s224 = sphi 0, %s222
      %s225 = sphi 0, %s224
      %s239 = sphi 0, %s225
      %s243 = sphi 0, %s243
      %s245 = sphi 0, %s243
      %s246 = sphi 0, %s245
      %s260 = sphi 0, %s246
      %s264 = sphi 0, %s264
      %s266 = sphi 0, %s264
      %s267 = sphi 0, %s266
      %s281 = sphi 0, %s267
      %s291 = sphi 0, %s293
      %s294 = sphi 0, %s291
      %s295 = sphi 0, %s294
      %s311 = sphi 0, %s295
    $region4: #{tpu_custom_call.1} parent=1 // loop_header_branch
      %23 = sbr.rel (%p21) target = $region8
    $region5: #{tpu_custom_call.1} parent=1 // loop_body
      %s25 = ssub.s32 %s20, 1
      %s26 = ssub.s32 %s20, 2
      %s36 = sadd.s32 1, %s29
      %p37 = scmp.ge.s32.totalorder %s36, 2
      %s38 = scalar_select %p37, 0, %s36
      %s39 = sadd.s32 1, %s28
      %s40 = scalar_select %p37, %s39, %s28
      %p41 = scmp.ge.s32.totalorder %s40, 2
      %s42 = scalar_select %p41, 0, %s40
      %s43 = sadd.s32 1, %s27
      %s44 = scalar_select %p41, %s43, %s27
      %p45 = scmp.ge.s32.totalorder %s44, 2
      %s46 = scalar_select %p45, 0, %s44
      %s47 = ssub.s32 %s27, %s46
      %s48 = ssub.s32 %s29, %s38
      %s49 = sor.u32 %s47, %s48
      %p50 = scmp.eq.s32.totalorder %s49, 0
      %s52 = sadd.s32 %s51, 1
      %s53 = scalar_select %p50, %s51, %s52
      %p56 = pneg %p50
      %p57 = scmp.eq.s32.totalorder %s20, 7
      %p58 = por %p56, %p57
      %p59 = scmp.ne.s32.totalorder %s51, %s54
      %p60 = scmp.eq.s32.totalorder %s20, 0
      %p61 = por %p59, %p60
      %p62 = scmp.ne.s32.totalorder %s51, %s54
      %p63 = scmp.eq.s32.totalorder %s25, 7
      %p64 = por %p62, %p63
      %p65 = scmp.ne.s32.totalorder %s54, %s55
      %p66 = scmp.eq.s32.totalorder %s25, 0
      %p67 = por %p65, %p66
      %p68 = scmp.ne.s32.totalorder %s54, %s55
      %p69 = scmp.eq.s32.totalorder %s26, 7
      %p70 = por %p68, %p69
      %p72 = scmp.ne.s32.totalorder %s55, %s71
      %p73 = scmp.eq.s32.totalorder %s26, 0
      %p74 = por %p72, %p73
      %s76 = sadd.s32 %s75, 1
      %p79 = scmp.eq.s32.totalorder %s20, 7
      %p80 = scmp.ne.s32.totalorder %s75, %s77
      %p81 = scmp.eq.s32.totalorder %s20, 0
      %p82 = por %p80, %p81
      %p83 = scmp.ne.s32.totalorder %s75, %s77
      %p84 = scmp.eq.s32.totalorder %s25, 7
      %p85 = por %p83, %p84
      %p86 = scmp.ne.s32.totalorder %s77, %s78
      %p87 = scmp.eq.s32.totalorder %s25, 0
      %p88 = por %p86, %p87
      %p89 = scmp.ne.s32.totalorder %s77, %s78
      %p90 = scmp.eq.s32.totalorder %s26, 7
      %p91 = por %p89, %p90
      %p93 = scmp.ne.s32.totalorder %s78, %s92
      %p94 = scmp.eq.s32.totalorder %s26, 0
      %p95 = por %p93, %p94
      %s97 = sadd.s32 %s96, 1
      %p100 = scmp.eq.s32.totalorder %s20, 7
      %p101 = scmp.ne.s32.totalorder %s96, %s98
      %p102 = scmp.eq.s32.totalorder %s20, 0
      %p103 = por %p101, %p102
      %p104 = scmp.ne.s32.totalorder %s96, %s98
      %p105 = scmp.eq.s32.totalorder %s25, 7
      %p106 = por %p104, %p105
      %p107 = scmp.ne.s32.totalorder %s98, %s99
      %p108 = scmp.eq.s32.totalorder %s25, 0
      %p109 = por %p107, %p108
      %p110 = scmp.ne.s32.totalorder %s98, %s99
      %p111 = scmp.eq.s32.totalorder %s26, 7
      %p112 = por %p110, %p111
      %p114 = scmp.ne.s32.totalorder %s99, %s113
      %p115 = scmp.eq.s32.totalorder %s26, 0
      %p116 = por %p114, %p115
      %s118 = sadd.s32 %s117, 1
      %p121 = scmp.eq.s32.totalorder %s20, 7
      %p122 = scmp.ne.s32.totalorder %s117, %s119
      %p123 = scmp.eq.s32.totalorder %s20, 0
      %p124 = por %p122, %p123
      %p125 = scmp.ne.s32.totalorder %s117, %s119
      %p126 = scmp.eq.s32.totalorder %s25, 7
      %p127 = por %p125, %p126
      %p128 = scmp.ne.s32.totalorder %s119, %s120
      %p129 = scmp.eq.s32.totalorder %s25, 0
      %p130 = por %p128, %p129
      %p131 = scmp.ne.s32.totalorder %s119, %s120
      %p132 = scmp.eq.s32.totalorder %s26, 7
      %p133 = por %p131, %p132
      %p135 = scmp.ne.s32.totalorder %s120, %s134
      %p136 = scmp.eq.s32.totalorder %s26, 0
      %p137 = por %p135, %p136
      %s139 = sadd.s32 %s138, 1
      %p142 = scmp.eq.s32.totalorder %s20, 7
      %p143 = scmp.ne.s32.totalorder %s138, %s140
      %p144 = scmp.eq.s32.totalorder %s20, 0
      %p145 = por %p143, %p144
      %p146 = scmp.ne.s32.totalorder %s138, %s140
      %p147 = scmp.eq.s32.totalorder %s25, 7
      %p148 = por %p146, %p147
      %p149 = scmp.ne.s32.totalorder %s140, %s141
      %p150 = scmp.eq.s32.totalorder %s25, 0
      %p151 = por %p149, %p150
      %p152 = scmp.ne.s32.totalorder %s140, %s141
      %p153 = scmp.eq.s32.totalorder %s26, 7
      %p154 = por %p152, %p153
      %p156 = scmp.ne.s32.totalorder %s141, %s155
      %p157 = scmp.eq.s32.totalorder %s26, 0
      %p158 = por %p156, %p157
      %s160 = sadd.s32 %s159, 1
      %p163 = scmp.eq.s32.totalorder %s20, 7
      %p164 = scmp.ne.s32.totalorder %s159, %s161
      %p165 = scmp.eq.s32.totalorder %s20, 0
      %p166 = por %p164, %p165
      %p167 = scmp.ne.s32.totalorder %s159, %s161
      %p168 = scmp.eq.s32.totalorder %s25, 7
      %p169 = por %p167, %p168
      %p170 = scmp.ne.s32.totalorder %s161, %s162
      %p171 = scmp.eq.s32.totalorder %s25, 0
      %p172 = por %p170, %p171
      %p173 = scmp.ne.s32.totalorder %s161, %s162
      %p174 = scmp.eq.s32.totalorder %s26, 7
      %p175 = por %p173, %p174
      %p177 = scmp.ne.s32.totalorder %s162, %s176
      %p178 = scmp.eq.s32.totalorder %s26, 0
      %p179 = por %p177, %p178
      %s181 = sadd.s32 %s180, 1
      %p184 = scmp.eq.s32.totalorder %s20, 7
      %p185 = scmp.ne.s32.totalorder %s180, %s182
      %p186 = scmp.eq.s32.totalorder %s20, 0
      %p187 = por %p185, %p186
      %p188 = scmp.ne.s32.totalorder %s180, %s182
      %p189 = scmp.eq.s32.totalorder %s25, 7
      %p190 = por %p188, %p189
      %p191 = scmp.ne.s32.totalorder %s182, %s183
      %p192 = scmp.eq.s32.totalorder %s25, 0
      %p193 = por %p191, %p192
      %p194 = scmp.ne.s32.totalorder %s182, %s183
      %p195 = scmp.eq.s32.totalorder %s26, 7
      %p196 = por %p194, %p195
      %p198 = scmp.ne.s32.totalorder %s183, %s197
      %p199 = scmp.eq.s32.totalorder %s26, 0
      %p200 = por %p198, %p199
      %s202 = sadd.s32 %s201, 1
      %p205 = scmp.eq.s32.totalorder %s20, 7
      %p206 = scmp.ne.s32.totalorder %s201, %s203
      %p207 = scmp.eq.s32.totalorder %s20, 0
      %p208 = por %p206, %p207
      %p209 = scmp.ne.s32.totalorder %s201, %s203
      %p210 = scmp.eq.s32.totalorder %s25, 7
      %p211 = por %p209, %p210
      %p212 = scmp.ne.s32.totalorder %s203, %s204
      %p213 = scmp.eq.s32.totalorder %s25, 0
      %p214 = por %p212, %p213
      %p215 = scmp.ne.s32.totalorder %s203, %s204
      %p216 = scmp.eq.s32.totalorder %s26, 7
      %p217 = por %p215, %p216
      %p219 = scmp.ne.s32.totalorder %s204, %s218
      %p220 = scmp.eq.s32.totalorder %s26, 0
      %p221 = por %p219, %p220
      %s223 = sadd.s32 %s222, 1
      %p226 = scmp.eq.s32.totalorder %s20, 7
      %p227 = scmp.ne.s32.totalorder %s222, %s224
      %p228 = scmp.eq.s32.totalorder %s20, 0
      %p229 = por %p227, %p228
      %p230 = scmp.ne.s32.totalorder %s222, %s224
      %p231 = scmp.eq.s32.totalorder %s25, 7
      %p232 = por %p230, %p231
      %p233 = scmp.ne.s32.totalorder %s224, %s225
      %p234 = scmp.eq.s32.totalorder %s25, 0
      %p235 = por %p233, %p234
      %p236 = scmp.ne.s32.totalorder %s224, %s225
      %p237 = scmp.eq.s32.totalorder %s26, 7
      %p238 = por %p236, %p237
      %p240 = scmp.ne.s32.totalorder %s225, %s239
      %p241 = scmp.eq.s32.totalorder %s26, 0
      %p242 = por %p240, %p241
      %s244 = sadd.s32 %s243, 1
      %p247 = scmp.eq.s32.totalorder %s20, 7
      %p248 = scmp.ne.s32.totalorder %s243, %s245
      %p249 = scmp.eq.s32.totalorder %s20, 0
      %p250 = por %p248, %p249
      %p251 = scmp.ne.s32.totalorder %s243, %s245
      %p252 = scmp.eq.s32.totalorder %s25, 7
      %p253 = por %p251, %p252
      %p254 = scmp.ne.s32.totalorder %s245, %s246
      %p255 = scmp.eq.s32.totalorder %s25, 0
      %p256 = por %p254, %p255
      %p257 = scmp.ne.s32.totalorder %s245, %s246
      %p258 = scmp.eq.s32.totalorder %s26, 7
      %p259 = por %p257, %p258
      %p261 = scmp.ne.s32.totalorder %s246, %s260
      %p262 = scmp.eq.s32.totalorder %s26, 0
      %p263 = por %p261, %p262
      %s265 = sadd.s32 %s264, 1
      %p268 = scmp.eq.s32.totalorder %s20, 7
      %p269 = scmp.ne.s32.totalorder %s264, %s266
      %p270 = scmp.eq.s32.totalorder %s20, 0
      %p271 = por %p269, %p270
      %p272 = scmp.ne.s32.totalorder %s264, %s266
      %p273 = scmp.eq.s32.totalorder %s25, 7
      %p274 = por %p272, %p273
      %p275 = scmp.ne.s32.totalorder %s266, %s267
      %p276 = scmp.eq.s32.totalorder %s25, 0
      %p277 = por %p275, %p276
      %p278 = scmp.ne.s32.totalorder %s266, %s267
      %p279 = scmp.eq.s32.totalorder %s26, 7
      %p280 = por %p278, %p279
      %p282 = scmp.ne.s32.totalorder %s267, %s281
      %p283 = scmp.eq.s32.totalorder %s26, 0
      %p284 = por %p282, %p283
      %s285 = smul.u32 %s29, %s28
      %s286 = smul.u32 %s38, %s42
      %s287 = ssub.s32 %s27, %s46
      %s288 = ssub.s32 %s285, %s286
      %s289 = sor.u32 %s287, %s288
      %p290 = scmp.eq.s32.totalorder %s289, 0
      %s292 = sadd.s32 %s291, 1
      %s293 = scalar_select %p290, %s291, %s292
      %p296 = pneg %p290
      %p297 = scmp.eq.s32.totalorder %s20, 7
      %p298 = por %p296, %p297
      %p299 = scmp.ne.s32.totalorder %s291, %s294
      %p300 = scmp.eq.s32.totalorder %s20, 0
      %p301 = por %p299, %p300
      %p302 = scmp.ne.s32.totalorder %s291, %s294
      %p303 = scmp.eq.s32.totalorder %s25, 7
      %p304 = por %p302, %p303
      %p305 = scmp.ne.s32.totalorder %s294, %s295
      %p306 = scmp.eq.s32.totalorder %s25, 0
      %p307 = por %p305, %p306
      %p308 = scmp.ne.s32.totalorder %s294, %s295
      %p309 = scmp.eq.s32.totalorder %s26, 7
      %p310 = por %p308, %p309
      %p312 = scmp.ne.s32.totalorder %s295, %s311
      %p313 = scmp.eq.s32.totalorder %s26, 0
      %p314 = por %p312, %p313
      %p315 = scmp.le.s32.totalorder 1, %s20
      %p316 = scmp.lt.s32.totalorder %s20, 9
      %p317 = pnand %p315, %p316
      %p318 = pneg %p317
      // Predicated region
      $region9: #{tpu_custom_call.1} parent=5 // pred_check
        _
      $region10: #{tpu_custom_call.1} parent=5 // pred_check_branch
        %320 = sbr.rel (%p317) target = $region12
      $region11: #{tpu_custom_call.1} parent=5 // pred_region
        %s321 = ssub.s32 %s20, 1
        // Predicated region
        $region13: #{tpu_custom_call.1} parent=11 // pred_check
          %p322 = pneg %p88
        $region14: #{tpu_custom_call.1} parent=11 // pred_check_branch
          %324 = sbr.rel (%p322) target = $region16
        $region15: #{tpu_custom_call.1} parent=11 // pred_region
          _
        $region16: #{tpu_custom_call.1} parent=11 // pred_fallthru
          _
        // Predicated region
        $region17: #{tpu_custom_call.1} parent=11 // pred_check
          %p325 = pneg %p109
        $region18: #{tpu_custom_call.1} parent=11 // pred_check_branch
          %327 = sbr.rel (%p325) target = $region20
        $region19: #{tpu_custom_call.1} parent=11 // pred_region
          _
        $region20: #{tpu_custom_call.1} parent=11 // pred_fallthru
          _
        // Predicated region
        $region21: #{tpu_custom_call.1} parent=11 // pred_check
          %p328 = pneg %p130
        $region22: #{tpu_custom_call.1} parent=11 // pred_check_branch
          %330 = sbr.rel (%p328) target = $region24
        $region23: #{tpu_custom_call.1} parent=11 // pred_region
          _
        $region24: #{tpu_custom_call.1} parent=11 // pred_fallthru
          _
        // Predicated region
        $region25: #{tpu_custom_call.1} parent=11 // pred_check
          %p331 = pneg %p151
        $region26: #{tpu_custom_call.1} parent=11 // pred_check_branch
          %333 = sbr.rel (%p331) target = $region28
        $region27: #{tpu_custom_call.1} parent=11 // pred_region
          _
        $region28: #{tpu_custom_call.1} parent=11 // pred_fallthru
          _
        // Predicated region
        $region29: #{tpu_custom_call.1} parent=11 // pred_check
          %p334 = pneg %p172
        $region30: #{tpu_custom_call.1} parent=11 // pred_check_branch
          %336 = sbr.rel (%p334) target = $region32
        $region31: #{tpu_custom_call.1} parent=11 // pred_region
          _
        $region32: #{tpu_custom_call.1} parent=11 // pred_fallthru
          _
        // Predicated region
        $region33: #{tpu_custom_call.1} parent=11 // pred_check
          %p337 = pneg %p193
        $region34: #{tpu_custom_call.1} parent=11 // pred_check_branch
          %339 = sbr.rel (%p337) target = $region36
        $region35: #{tpu_custom_call.1} parent=11 // pred_region
          _
        $region36: #{tpu_custom_call.1} parent=11 // pred_fallthru
          _
        // Predicated region
        $region37: #{tpu_custom_call.1} parent=11 // pred_check
          %p340 = pneg %p214
        $region38: #{tpu_custom_call.1} parent=11 // pred_check_branch
          %342 = sbr.rel (%p340) target = $region40
        $region39: #{tpu_custom_call.1} parent=11 // pred_region
          _
        $region40: #{tpu_custom_call.1} parent=11 // pred_fallthru
          _
        // Predicated region
        $region41: #{tpu_custom_call.1} parent=11 // pred_check
          %p343 = pneg %p235
        $region42: #{tpu_custom_call.1} parent=11 // pred_check_branch
          %345 = sbr.rel (%p343) target = $region44
        $region43: #{tpu_custom_call.1} parent=11 // pred_region
          _
        $region44: #{tpu_custom_call.1} parent=11 // pred_fallthru
          _
        // Predicated region
        $region45: #{tpu_custom_call.1} parent=11 // pred_check
          %p346 = pneg %p256
        $region46: #{tpu_custom_call.1} parent=11 // pred_check_branch
          %348 = sbr.rel (%p346) target = $region48
        $region47: #{tpu_custom_call.1} parent=11 // pred_region
          _
        $region48: #{tpu_custom_call.1} parent=11 // pred_fallthru
          _
        // Predicated region
        $region49: #{tpu_custom_call.1} parent=11 // pred_check
          %p349 = pneg %p277
        $region50: #{tpu_custom_call.1} parent=11 // pred_check_branch
          %351 = sbr.rel (%p349) target = $region52
        $region51: #{tpu_custom_call.1} parent=11 // pred_region
          _
        $region52: #{tpu_custom_call.1} parent=11 // pred_fallthru
          _
      $region12: #{tpu_custom_call.1} parent=5 // pred_fallthru
        _
      %p352 = scmp.lt.s32.totalorder %s20, 8
      // Predicated region
      $region53: #{tpu_custom_call.1} parent=5 // pred_check
        %p353 = pneg %p352
      $region54: #{tpu_custom_call.1} parent=5 // pred_check_branch
        %355 = sbr.rel (%p353) target = $region56
      $region55: #{tpu_custom_call.1} parent=5 // pred_region
        // Predicated region
        $region57: #{tpu_custom_call.1} parent=55 // pred_check
          %p356 = pneg %p61
        $region58: #{tpu_custom_call.1} parent=55 // pred_check_branch
          %358 = sbr.rel (%p356) target = $region60
        $region59: #{tpu_custom_call.1} parent=55 // pred_region
          %s359 = sand.u32 %s51, 1
          %s360 = sand.u32 %s51, 1
          %s361 = smul.addr %s360, 32
          %s362 = scalar_lea.vmem [#allocation4], %s361
          %s363 = smul.addr %s27, 8
          %s364 = sadd.s32 %s29, %s363
          %s365 = smul.addr %s364, 8
          %s366 = scalar_lea.vmem %s0, %s365
          // Predicated region
          $region61: #{tpu_custom_call.1} parent=59 // pred_check
            _
          $region62: #{tpu_custom_call.1} parent=59 // pred_check_branch
            %368 = sbr.rel (0) target = $region64
          $region63: #{tpu_custom_call.1} parent=59 // pred_region
            // Predicated region
            $region65: #{tpu_custom_call.1} parent=63 // pred_check
              _
            $region66: #{tpu_custom_call.1} parent=63 // pred_check_branch
              %370 = sbr.rel (0) target = $region68
            $region67: #{tpu_custom_call.1} parent=63 // pred_region
              // Predicated region
              $region80: #{tpu_custom_call.1} parent=67 // pred_check
                _
              $region81: #{tpu_custom_call.1} parent=67 // pred_check_branch
                %391 = sbr.rel (0) target = $region83
              $region82: #{tpu_custom_call.1} parent=67 // pred_region
                loop: start=0, step=1, limit=1
                $region84: #{tpu_custom_call.1} parent=82 // loop_pre_header
                  _
                $region85: #{tpu_custom_call.1} parent=82 // loop_header
                  %s393 = sphi 0, %s397
                  %p394 = scmp.ge.s32.totalorder %s393, 1
                  %s398 = sphi %s366, %s366
                  %s399 = sphi %s362, %s362
                $region86: #{tpu_custom_call.1} parent=82 // loop_header_branch
                  %396 = sbr.rel (%p394) target = $region90
                $region87: #{tpu_custom_call.1} parent=82 // loop_body
                  %v400 = vld [vmem:[%s398] sm:$0xff]
                  %401 = vst [vmem:[%s399] sm:$0xff] %v400
                  %v402 = vld [vmem:[%s398 + $0x10] sm:$0xff]
                  %403 = vst [vmem:[%s399 + $0x8] sm:$0xff] %v402
                  %v404 = vld [vmem:[%s398 + $0x20] sm:$0xff]
                  %405 = vst [vmem:[%s399 + $0x10] sm:$0xff] %v404
                  %v406 = vld [vmem:[%s398 + $0x30] sm:$0xff]
                  %407 = vst [vmem:[%s399 + $0x18] sm:$0xff] %v406
                $region88: #{tpu_custom_call.1} parent=82 // loop_footer
                  %s397 = sadd.s32 1, %s393
                $region89: #{tpu_custom_call.1} parent=82 // loop_footer_branch
                  %392 = sbr.rel target = $region85
                $region90: #{tpu_custom_call.1} parent=82 // loop_exit
                  _
              $region83: #{tpu_custom_call.1} parent=67 // pred_fallthru
                _
              // Predicated region
              $region91: #{tpu_custom_call.1} parent=67 // pred_check
                _
              $region92: #{tpu_custom_call.1} parent=67 // pred_check_branch
                %409 = sbr.rel target = $region94
              $region93: #{tpu_custom_call.1} parent=67 // pred_region
                _
              $region94: #{tpu_custom_call.1} parent=67 // pred_fallthru
                _
            $region68: #{tpu_custom_call.1} parent=63 // pred_fallthru
              _
            // Predicated region
            $region69: #{tpu_custom_call.1} parent=63 // pred_check
              _
            $region70: #{tpu_custom_call.1} parent=63 // pred_check_branch
              %372 = sbr.rel target = $region72
            $region71: #{tpu_custom_call.1} parent=63 // pred_region
              loop: start=0, step=1, limit=1
              $region73: #{tpu_custom_call.1} parent=71 // loop_pre_header
                _
              $region74: #{tpu_custom_call.1} parent=71 // loop_header
                %s375 = sphi 0, %s379
                %p376 = scmp.ge.s32.totalorder %s375, 1
                %s380 = sphi %s366, %s366
                %s381 = sphi %s362, %s362
              $region75: #{tpu_custom_call.1} parent=71 // loop_header_branch
                %378 = sbr.rel (%p376) target = $region79
              $region76: #{tpu_custom_call.1} parent=71 // loop_body
                %v382 = vld [vmem:[%s380] sm:$0xff]
                %383 = vst [vmem:[%s381] sm:$0xff] %v382
                %v384 = vld [vmem:[%s380 + $0x10] sm:$0xff]
                %385 = vst [vmem:[%s381 + $0x8] sm:$0xff] %v384
                %v386 = vld [vmem:[%s380 + $0x20] sm:$0xff]
                %387 = vst [vmem:[%s381 + $0x10] sm:$0xff] %v386
                %v388 = vld [vmem:[%s380 + $0x30] sm:$0xff]
                %389 = vst [vmem:[%s381 + $0x18] sm:$0xff] %v388
              $region77: #{tpu_custom_call.1} parent=71 // loop_footer
                %s379 = sadd.s32 1, %s375
              $region78: #{tpu_custom_call.1} parent=71 // loop_footer_branch
                %374 = sbr.rel target = $region74
              $region79: #{tpu_custom_call.1} parent=71 // loop_exit
                _
            $region72: #{tpu_custom_call.1} parent=63 // pred_fallthru
              _
          $region64: #{tpu_custom_call.1} parent=59 // pred_fallthru
            _
          %410 = vnop
        $region60: #{tpu_custom_call.1} parent=55 // pred_fallthru
          _
      $region56: #{tpu_custom_call.1} parent=5 // pred_fallthru
        _
      %p411 = scmp.le.s32.totalorder 1, %s20
      %p412 = scmp.lt.s32.totalorder %s20, 9
      %p413 = pnand %p411, %p412
      %p414 = pneg %p413
      // Predicated region
      $region95: #{tpu_custom_call.1} parent=5 // pred_check
        _
      $region96: #{tpu_custom_call.1} parent=5 // pred_check_branch
        %416 = sbr.rel (%p413) target = $region98
      $region97: #{tpu_custom_call.1} parent=5 // pred_region
        %s417 = ssub.s32 %s20, 1
        %s418 = sand.u32 %s54, 1
        %s419 = sand.u32 %s54, 1
        %s420 = smul.addr %s419, 32
        %s421 = scalar_lea.vmem [#allocation4], %s420
        // Predicated region
        $region99: #{tpu_custom_call.1} parent=97 // pred_check
          %p422 = pneg %p67
        $region100: #{tpu_custom_call.1} parent=97 // pred_check_branch
          %424 = sbr.rel (%p422) target = $region102
        $region101: #{tpu_custom_call.1} parent=97 // pred_region
          _
        $region102: #{tpu_custom_call.1} parent=97 // pred_fallthru
          _
        %s425 = sand.u32 %s54, 1
        %s426 = sand.u32 %s54, 1
        %s427 = smul.addr %s426, 32
        %s428 = scalar_lea.vmem [#allocation4], %s427
        %p429 = pneg %p67
        %p430 = pneg %p64
        %p431 = pneg %p88
        %p432 = pneg %p85
        %p433 = pneg %p109
        %p434 = pneg %p106
        %p435 = pneg %p130
        %p436 = pneg %p127
        %p437 = pneg %p151
        %p438 = pneg %p148
        %p439 = pneg %p172
        %p440 = pneg %p169
        %p441 = pneg %p193
        %p442 = pneg %p190
        %p443 = pneg %p214
        %p444 = pneg %p211
        %p445 = pneg %p235
        %p446 = pneg %p232
        %p447 = pneg %p256
        %p448 = pneg %p253
        %p449 = pneg %p277
        %p450 = pneg %p274
        %p451 = pneg %p307
        %p452 = pneg %p304
        %s453 = sand.u32 %s294, 1
        %s454 = scalar_lea.sflag [#allocation6], %s453
        %s455 = sand.u32 %s294, 1
        %s456 = smul.addr %s455, 32
        %s457 = scalar_lea.vmem [#allocation5], %s456
        %s458 = smul.u32 %s32, %s31
        %v460 = vld [vmem:[%s421] sm:$0xff]
        %v461 = vld [vmem:[%s421 + $0x8] sm:$0xff]
        %v462 = vld [vmem:[%s421 + $0x10] sm:$0xff]
        %v463 = vld [vmem:[%s421 + $0x18] sm:$0xff]
        %v464 = vpack.c.bf16 %v461, %v460
        %v465 = vpack.c.bf16 %v463, %v462
        %v466 = vld [vmem:[%s1] sm:$0xf]
        %v467 = vld [vmem:[%s1 + $0x4] sm:$0xf]
        %v468 = vld [vmem:[%s2] sm:$0xff]
        %v469 = vld [vmem:[%s2 + $0x8] sm:$0xff]
        %471 = vset.pattern.permute.xlu0 0
        %472 = vperm.xlu0 %471, %v468
        %v473 = vpop.permute.xlu0 %472
        %476 = vset.pattern.permute.xlu0 0
        %477 = vperm.xlu0 %476, %v469
        %v478 = vpop.permute.xlu0 %477
        %v482 = vunpack.c.l.b16 %v466
        %v483 = vunpack.c.l.b16 %v467
        %v484 = vpack.c.b16 %v483, %v482
        %vm485 = vcmask 261120
        %v487 = vsel %vm485, %v484, 0
        %489 = vmatprep.subr.bf16.mxu0 0
        %490 = vmatpush1.bf16.msra.mxu0 %v464
        %491 = vmatprep.subr.bf16.mxu0 0
        %492 = vmatpush1.bf16.msra.mxu0 %v465
        %493 = vmatprep.subr.bf16.mxu0 0
        %494 = vmatpush1.bf16.msra.mxu0 0
        %495 = vmatprep.subr.bf16.mxu0 0
        %496 = vmatpush1.bf16.msra.mxu0 0
        %497 = vmatprep.subr.bf16.mxu0 0
        %498 = vmatpush1.bf16.msra.mxu0 0
        %499 = vmatprep.subr.bf16.mxu0 0
        %500 = vmatpush1.bf16.msra.mxu0 0
        %501 = vmatprep.subr.bf16.mxu0 0
        %502 = vmatpush1.bf16.msra.mxu0 0
        %503 = vmatprep.subr.bf16.mxu0 0
        %504 = vmatpush1.bf16.msra.mxu0 0
        %505 = vmatprep.subr.bf16.mxu0 0
        %506 = vmatpush1.bf16.msra.mxu0 0
        %507 = vmatprep.subr.bf16.mxu0 0
        %508 = vmatpush1.bf16.msra.mxu0 0
        %509 = vmatprep.subr.bf16.mxu0 0
        %510 = vmatpush1.bf16.msra.mxu0 0
        %511 = vmatprep.subr.bf16.mxu0 0
        %512 = vmatpush1.bf16.msra.mxu0 0
        %513 = vmatprep.subr.bf16.mxu0 0
        %514 = vmatpush1.bf16.msra.mxu0 0
        %515 = vmatprep.subr.bf16.mxu0 0
        %516 = vmatpush1.bf16.msra.mxu0 0
        %517 = vmatprep.subr.bf16.mxu0 0
        %518 = vmatpush1.bf16.msra.mxu0 0
        %519 = vmatprep.subr.bf16.mxu0 0
        %520 = vmatpush1.bf16.msra.mxu0 0
        %521 = vmatprep.mubr.bf16.mxu0 0
        %522 = vmatmul.mubr.bf16.gmra.mrb[0].mxu0 %v487
        %v523 = vpop.f32.mrb[0].mxu0
        %v524 = vadd.f32 %v473, %v523
        %v525 = vpop.f32.mrb[0].mxu0
        %v526 = vpop.f32.mrb[0].mxu0
        %v527 = vadd.f32 %v478, %v526
        %v528 = vpop.f32.mrb[0].mxu0
        %529 = vdwg.mxu0
        %v530 = vmax.f32 %v524, 0.0
        %v531 = vmax.f32 %v527, 0.0
        %v532 = vld [vmem:[%s3] sm:$0xf]
        %v533 = vld [vmem:[%s3 + $0x4] sm:$0xf]
        %v534 = vpack.c.bf16 %v531, %v530
        %v535 = vld [vmem:[%s4] sm:$0xff]
        %v536 = vld [vmem:[%s4 + $0x8] sm:$0xff]
        %538 = vset.pattern.permute.xlu0 0
        %539 = vperm.xlu0 %538, %v535
        %v540 = vpop.permute.xlu0 %539
        %543 = vset.pattern.permute.xlu0 0
        %544 = vperm.xlu0 %543, %v536
        %v545 = vpop.permute.xlu0 %544
        %v549 = vunpack.c.l.b16 %v532
        %v550 = vunpack.c.l.b16 %v533
        %v551 = vpack.c.b16 %v550, %v549
        %vm552 = vcmask 130048
        %v554 = vsel %vm552, %v551, 0
        %556 = vmatprep.subr.bf16.mxu0 0
        %557 = vmatpush1.bf16.msra.mxu0 %v534
        %558 = vmatprep.subr.bf16.mxu0 0
        %559 = vmatpush1.bf16.msra.mxu0 0
        %560 = vmatprep.subr.bf16.mxu0 0
        %561 = vmatpush1.bf16.msra.mxu0 0
        %562 = vmatprep.subr.bf16.mxu0 0
        %563 = vmatpush1.bf16.msra.mxu0 0
        %564 = vmatprep.subr.bf16.mxu0 0
        %565 = vmatpush1.bf16.msra.mxu0 0
        %566 = vmatprep.subr.bf16.mxu0 0
        %567 = vmatpush1.bf16.msra.mxu0 0
        %568 = vmatprep.subr.bf16.mxu0 0
        %569 = vmatpush1.bf16.msra.mxu0 0
        %570 = vmatprep.subr.bf16.mxu0 0
        %571 = vmatpush1.bf16.msra.mxu0 0
        %572 = vmatprep.subr.bf16.mxu0 0
        %573 = vmatpush1.bf16.msra.mxu0 0
        %574 = vmatprep.subr.bf16.mxu0 0
        %575 = vmatpush1.bf16.msra.mxu0 0
        %576 = vmatprep.subr.bf16.mxu0 0
        %577 = vmatpush1.bf16.msra.mxu0 0
        %578 = vmatprep.subr.bf16.mxu0 0
        %579 = vmatpush1.bf16.msra.mxu0 0
        %580 = vmatprep.subr.bf16.mxu0 0
        %581 = vmatpush1.bf16.msra.mxu0 0
        %582 = vmatprep.subr.bf16.mxu0 0
        %583 = vmatpush1.bf16.msra.mxu0 0
        %584 = vmatprep.subr.bf16.mxu0 0
        %585 = vmatpush1.bf16.msra.mxu0 0
        %586 = vmatprep.subr.bf16.mxu0 0
        %587 = vmatpush1.bf16.msra.mxu0 0
        %588 = vmatprep.mubr.bf16.mxu0 0
        %589 = vmatmul.mubr.bf16.gmra.mrb[0].mxu0 %v554
        %v590 = vpop.f32.mrb[0].mxu0
        %v591 = vadd.f32 %v540, %v590
        %v592 = vpop.f32.mrb[0].mxu0
        %v593 = vpop.f32.mrb[0].mxu0
        %v594 = vadd.f32 %v545, %v593
        %v595 = vpop.f32.mrb[0].mxu0
        %596 = vdwg.mxu0
        %v597 = vmax.f32 %v591, 0.0
        %v598 = vmax.f32 %v594, 0.0
        %v599 = vld [vmem:[%s5] sm:$0xf]
        %v600 = vld [vmem:[%s5 + $0x4] sm:$0xf]
        %v601 = vld [vmem:[%s5 + $0x8] sm:$0xf]
        %v602 = vld [vmem:[%s5 + $0xc] sm:$0xf]
        %v603 = vpack.c.bf16 %v598, %v597
        %v604 = vld [vmem:[%s6] sm:$0xff]
        %v605 = vld [vmem:[%s6 + $0x8] sm:$0xff]
        %v606 = vld [vmem:[%s6 + $0x10] sm:$0xff]
        %v607 = vld [vmem:[%s6 + $0x18] sm:$0xff]
        %609 = vset.pattern.permute.xlu0 0
        %610 = vperm.xlu0 %609, %v604
        %v611 = vpop.permute.xlu0 %610
        %614 = vset.pattern.permute.xlu0 0
        %615 = vperm.xlu0 %614, %v605
        %v616 = vpop.permute.xlu0 %615
        %619 = vset.pattern.permute.xlu0 0
        %620 = vperm.xlu0 %619, %v606
        %v621 = vpop.permute.xlu0 %620
        %624 = vset.pattern.permute.xlu0 0
        %625 = vperm.xlu0 %624, %v607
        %v626 = vpop.permute.xlu0 %625
        %v632 = vunpack.c.l.b16 %v599
        %v633 = vunpack.c.l.b16 %v600
        %v634 = vunpack.c.l.b16 %v601
        %v635 = vunpack.c.l.b16 %v602
        %v636 = vpack.c.b16 %v633, %v632
        %v637 = vpack.c.b16 %v635, %v634
        %v639 = vsel %vm552, %v636, 0
        %v642 = vsel %vm552, %v637, 0
        %644 = vmatprep.subr.bf16.mxu0 0
        %645 = vmatpush1.bf16.msra.mxu0 %v603
        %646 = vmatprep.subr.bf16.mxu0 0
        %647 = vmatpush1.bf16.msra.mxu0 0
        %648 = vmatprep.subr.bf16.mxu0 0
        %649 = vmatpush1.bf16.msra.mxu0 0
        %650 = vmatprep.subr.bf16.mxu0 0
        %651 = vmatpush1.bf16.msra.mxu0 0
        %652 = vmatprep.subr.bf16.mxu0 0
        %653 = vmatpush1.bf16.msra.mxu0 0
        %654 = vmatprep.subr.bf16.mxu0 0
        %655 = vmatpush1.bf16.msra.mxu0 0
        %656 = vmatprep.subr.bf16.mxu0 0
        %657 = vmatpush1.bf16.msra.mxu0 0
        %658 = vmatprep.subr.bf16.mxu0 0
        %659 = vmatpush1.bf16.msra.mxu0 0
        %660 = vmatprep.subr.bf16.mxu0 0
        %661 = vmatpush1.bf16.msra.mxu0 0
        %662 = vmatprep.subr.bf16.mxu0 0
        %663 = vmatpush1.bf16.msra.mxu0 0
        %664 = vmatprep.subr.bf16.mxu0 0
        %665 = vmatpush1.bf16.msra.mxu0 0
        %666 = vmatprep.subr.bf16.mxu0 0
        %667 = vmatpush1.bf16.msra.mxu0 0
        %668 = vmatprep.subr.bf16.mxu0 0
        %669 = vmatpush1.bf16.msra.mxu0 0
        %670 = vmatprep.subr.bf16.mxu0 0
        %671 = vmatpush1.bf16.msra.mxu0 0
        %672 = vmatprep.subr.bf16.mxu0 0
        %673 = vmatpush1.bf16.msra.mxu0 0
        %674 = vmatprep.subr.bf16.mxu0 0
        %675 = vmatpush1.bf16.msra.mxu0 0
        %676 = vmatprep.mubr.bf16.mxu0 0
        %677 = vmatmul.mubr.bf16.gmra.mrb[0].mxu0 %v639
        %v678 = vpop.f32.mrb[0].mxu0
        %v679 = vadd.f32 %v611, %v678
        %v680 = vpop.f32.mrb[0].mxu0
        %v681 = vpop.f32.mrb[0].mxu0
        %v682 = vadd.f32 %v616, %v681
        %v683 = vpop.f32.mrb[0].mxu0
        %684 = vmatprep.mubr.bf16.mxu0 0
        %685 = vmatmul.mubr.bf16.gmra.mrb[0].mxu0 %v642
        %v686 = vpop.f32.mrb[0].mxu0
        %v687 = vadd.f32 %v621, %v686
        %v688 = vpop.f32.mrb[0].mxu0
        %v689 = vpop.f32.mrb[0].mxu0
        %v690 = vadd.f32 %v626, %v689
        %v691 = vpop.f32.mrb[0].mxu0
        %692 = vdwg.mxu0
        %p693 = scmp.eq.s32.totalorder %s31, 0
        // Predicated region
        $region103: #{tpu_custom_call.1} parent=97 // pred_check
          %p694 = pneg %p693
        $region104: #{tpu_custom_call.1} parent=97 // pred_check_branch
          %696 = sbr.rel (%p694) target = $region106
        $region105: #{tpu_custom_call.1} parent=97 // pred_region
          %697 = vadd.xlane.f32.xlu0 %v679
          %v698 = vpop.xlane.xlu0 %697
          %699 = vadd.xlane.f32.xlu0 %v682
          %v700 = vpop.xlane.xlu0 %699
          %701 = vadd.xlane.f32.xlu0 %v687
          %v702 = vpop.xlane.xlu0 %701
          %703 = vadd.xlane.f32.xlu0 %v690
          %v704 = vpop.xlane.xlu0 %703
          %p705 = scmp.eq.s32.totalorder %s32, 0
          // Predicated region
          $region107: #{tpu_custom_call.1} parent=105 // pred_check
            %p706 = pneg %p705
          $region108: #{tpu_custom_call.1} parent=105 // pred_check_branch
            %708 = sbr.rel (%p706) target = $region110
          $region109: #{tpu_custom_call.1} parent=105 // pred_region
            %vm709 = vcmask 7168
            %710 = vst.msk [vmem:[#allocation2] sm:$0xff] %vm709, %v698
            %711 = vst.msk [vmem:[#allocation2 + $0x8] sm:$0xff] %vm709, %v700
            %712 = vst.msk [vmem:[#allocation2 + $0x10] sm:$0xff] %vm709, %v702
            %713 = vst.msk [vmem:[#allocation2 + $0x18] sm:$0xff] %vm709, %v704
          $region110: #{tpu_custom_call.1} parent=105 // pred_fallthru
            _
          %p714 = scmp.ne.s32.totalorder %s32, 0
          // Predicated region
          $region111: #{tpu_custom_call.1} parent=105 // pred_check
            %p715 = pneg %p714
          $region112: #{tpu_custom_call.1} parent=105 // pred_check_branch
            %717 = sbr.rel (%p715) target = $region114
          $region113: #{tpu_custom_call.1} parent=105 // pred_region
            %v718 = vld [vmem:[#allocation2] sm:$0xff]
            %v719 = vld [vmem:[#allocation2 + $0x8] sm:$0xff]
            %v720 = vld [vmem:[#allocation2 + $0x10] sm:$0xff]
            %v721 = vld [vmem:[#allocation2 + $0x18] sm:$0xff]
            %v722 = vadd.f32 %v718, %v698
            %v723 = vadd.f32 %v719, %v700
            %v724 = vadd.f32 %v720, %v702
            %v725 = vadd.f32 %v721, %v704
            %vm726 = vcmask 7168
            %727 = vst.msk [vmem:[#allocation2] sm:$0xff] %vm726, %v722
            %728 = vst.msk [vmem:[#allocation2 + $0x8] sm:$0xff] %vm726, %v723
            %729 = vst.msk [vmem:[#allocation2 + $0x10] sm:$0xff] %vm726, %v724
            %730 = vst.msk [vmem:[#allocation2 + $0x18] sm:$0xff] %vm726, %v725
          $region114: #{tpu_custom_call.1} parent=105 // pred_fallthru
            _
        $region106: #{tpu_custom_call.1} parent=97 // pred_fallthru
          _
        %p731 = scmp.eq.s32.totalorder %s31, 1
        // Predicated region
        $region115: #{tpu_custom_call.1} parent=97 // pred_check
          %p732 = pneg %p731
        $region116: #{tpu_custom_call.1} parent=97 // pred_check_branch
          %734 = sbr.rel (%p732) target = $region118
        $region117: #{tpu_custom_call.1} parent=97 // pred_region
          %p735 = scmp.eq.s32.totalorder %s32, 0
          // Predicated region
          $region119: #{tpu_custom_call.1} parent=117 // pred_check
            %p736 = pneg %p735
          $region120: #{tpu_custom_call.1} parent=117 // pred_check_branch
            %738 = sbr.rel (%p736) target = $region122
          $region121: #{tpu_custom_call.1} parent=117 // pred_region
            %v739 = vld [vmem:[#allocation2] sm:$0xff]
            %v740 = vld [vmem:[#allocation2 + $0x8] sm:$0xff]
            %v741 = vld [vmem:[#allocation2 + $0x10] sm:$0xff]
            %v742 = vld [vmem:[#allocation2 + $0x18] sm:$0xff]
            %v743 = vmul.f32 %v739, 0.00390625
            %v744 = vmul.f32 %v740, 0.00390625
            %v745 = vmul.f32 %v741, 0.00390625
            %v746 = vmul.f32 %v742, 0.00390625
            %v747 = vld [vmem:[%s7] sm:$0xff]
            %v748 = vld [vmem:[%s7 + $0x8] sm:$0xff]
            %v749 = vld [vmem:[%s7 + $0x10] sm:$0xff]
            %v750 = vld [vmem:[%s7 + $0x18] sm:$0xff]
            %752 = vset.pattern.permute.xlu0 0
            %753 = vperm.xlu0 %752, %v743
            %v754 = vpop.permute.xlu0 %753
            %757 = vset.pattern.permute.xlu0 0
            %758 = vperm.xlu0 %757, %v744
            %v759 = vpop.permute.xlu0 %758
            %762 = vset.pattern.permute.xlu0 0
            %763 = vperm.xlu0 %762, %v745
            %v764 = vpop.permute.xlu0 %763
            %767 = vset.pattern.permute.xlu0 0
            %768 = vperm.xlu0 %767, %v746
            %v769 = vpop.permute.xlu0 %768
            %v771 = vmul.f32 %v747, %v754
            %v772 = vmul.f32 %v748, %v759
            %v773 = vmul.f32 %v749, %v764
            %v774 = vmul.f32 %v750, %v769
            %vm775 = vcmask 64512
            %v776 = vsel %vm775, %v771, 0.0
            %v777 = vsel %vm775, %v772, 0.0
            %v778 = vadd.f32 %v776, %v777
            %v779 = vsel %vm775, %v773, 0.0
            %v780 = vadd.f32 %v778, %v779
            %v781 = vsel %vm775, %v774, 0.0
            %v782 = vadd.f32 %v780, %v781
            %v783 = vrot.slane %v782, 4
            %v784 = vadd.f32 %v782, %v783
            %v785 = vrot.slane %v784, 2
            %v786 = vadd.f32 %v784, %v785
            %v787 = vrot.slane %v786, 1
            %v788 = vadd.f32 %v786, %v787
            %v789 = vld [vmem:[%s8] sm:$0x1]
            %v790 = vadd.f32 %v788, %v789
            %v791 = vmax.f32 %v790, 0.0
            %v792 = vld [vmem:[%s9] sm:$0xff]
            %v793 = vld [vmem:[%s9 + $0x8] sm:$0xff]
            %v794 = vld [vmem:[%s9 + $0x10] sm:$0xff]
            %v795 = vld [vmem:[%s9 + $0x18] sm:$0xff]
            %v796 = vlaneseq
            %v797 = vshrl.u32 %v796, 7
            %v798 = vsub.s32 0, %v797
            %v799 = vrot.slane %v791, %v798
            %v800 = vmul.f32 %v792, %v799
            %v801 = vmul.f32 %v793, %v799
            %v802 = vmul.f32 %v794, %v799
            %v803 = vmul.f32 %v795, %v799
            %v804 = vsel %vm775, %v800, 0.0
            %805 = vadd.xlane.f32.xlu0 %v804
            %v806 = vpop.xlane.xlu0 %805
            %v807 = vsel %vm775, %v801, 0.0
            %808 = vadd.xlane.f32.xlu0 %v807
            %v809 = vpop.xlane.xlu0 %808
            %v810 = vsel %vm775, %v802, 0.0
            %811 = vadd.xlane.f32.xlu0 %v810
            %v812 = vpop.xlane.xlu0 %811
            %v813 = vsel %vm775, %v803, 0.0
            %814 = vadd.xlane.f32.xlu0 %v813
            %v815 = vpop.xlane.xlu0 %814
            %v816 = vld [vmem:[%s10] sm:$0xff]
            %v817 = vld [vmem:[%s10 + $0x8] sm:$0xff]
            %v818 = vld [vmem:[%s10 + $0x10] sm:$0xff]
            %v819 = vld [vmem:[%s10 + $0x18] sm:$0xff]
            %v820 = vadd.f32 %v806, %v816
            %v821 = vadd.f32 %v809, %v817
            %v822 = vadd.f32 %v812, %v818
            %v823 = vadd.f32 %v815, %v819
            %v824 = vxor.u32 %v820, 2147483648
            %v825 = vxor.u32 %v821, 2147483648
            %v826 = vxor.u32 %v822, 2147483648
            %v827 = vxor.u32 %v823, 2147483648
            %v828 = vmul.f32 %v824, 1.442695
            %v829 = vpow.pop %v828
            %v830 = vmul.f32 %v825, 1.442695
            %v831 = vpow.pop %v830
            %v832 = vmul.f32 %v826, 1.442695
            %v833 = vpow.pop %v832
            %v834 = vmul.f32 %v827, 1.442695
            %v835 = vpow.pop %v834
            %v836 = vadd.f32 %v829, 1.0
            %v837 = vadd.f32 %v831, 1.0
            %v838 = vadd.f32 %v833, 1.0
            %v839 = vadd.f32 %v835, 1.0
            %v840 = vrcp.pop %v836
            %v841 = vmul.f32 1.0, %v840
            %v842 = vrcp.pop %v837
            %v843 = vmul.f32 1.0, %v842
            %v844 = vrcp.pop %v838
            %v845 = vmul.f32 1.0, %v844
            %v846 = vrcp.pop %v839
            %v847 = vmul.f32 1.0, %v846
            %vm848 = vcmask 7168
            %849 = vst.msk [vmem:[#allocation3] sm:$0xff] %vm848, %v841
            %850 = vst.msk [vmem:[#allocation3 + $0x8] sm:$0xff] %vm848, %v843
            %851 = vst.msk [vmem:[#allocation3 + $0x10] sm:$0xff] %vm848, %v845
            %852 = vst.msk [vmem:[#allocation3 + $0x18] sm:$0xff] %vm848, %v847
          $region122: #{tpu_custom_call.1} parent=117 // pred_fallthru
            _
          %v853 = vld [vmem:[#allocation3] sm:$0xff]
          %v854 = vld [vmem:[#allocation3 + $0x8] sm:$0xff]
          %v855 = vld [vmem:[#allocation3 + $0x10] sm:$0xff]
          %v856 = vld [vmem:[#allocation3 + $0x18] sm:$0xff]
          %858 = vset.pattern.permute.xlu0 0
          %859 = vperm.xlu0 %858, %v853
          %v860 = vpop.permute.xlu0 %859
          %863 = vset.pattern.permute.xlu0 0
          %864 = vperm.xlu0 %863, %v854
          %v865 = vpop.permute.xlu0 %864
          %868 = vset.pattern.permute.xlu0 0
          %869 = vperm.xlu0 %868, %v855
          %v870 = vpop.permute.xlu0 %869
          %873 = vset.pattern.permute.xlu0 0
          %874 = vperm.xlu0 %873, %v856
          %v875 = vpop.permute.xlu0 %874
          %v877 = vmul.f32 %v679, %v860
          %v878 = vmul.f32 %v682, %v865
          %v879 = vmul.f32 %v687, %v870
          %v880 = vmul.f32 %v690, %v875
          %v881 = vadd.f32 %v877, %v460
          %v882 = vadd.f32 %v878, %v461
          %v883 = vadd.f32 %v879, %v462
          %v884 = vadd.f32 %v880, %v463
          %v885 = vmax.f32 %v881, 0.0
          %v886 = vmax.f32 %v882, 0.0
          %v887 = vmax.f32 %v883, 0.0
          %v888 = vmax.f32 %v884, 0.0
          %889 = vst [vmem:[%s457] sm:$0xff] %v885
          %890 = vst [vmem:[%s457 + $0x8] sm:$0xff] %v886
          %891 = vst [vmem:[%s457 + $0x10] sm:$0xff] %v887
          %892 = vst [vmem:[%s457 + $0x18] sm:$0xff] %v888
        $region118: #{tpu_custom_call.1} parent=97 // pred_fallthru
          _
        %s893 = sand.u32 %s294, 1
        %s894 = scalar_lea.sflag [#allocation6], %s893
        %s895 = sand.u32 %s294, 1
        %s896 = smul.addr %s895, 32
        %s897 = scalar_lea.vmem [#allocation5], %s896
        // Predicated region
        $region123: #{tpu_custom_call.1} parent=97 // pred_check
          %p898 = pneg %p304
        $region124: #{tpu_custom_call.1} parent=97 // pred_check_branch
          %900 = sbr.rel (%p898) target = $region126
        $region125: #{tpu_custom_call.1} parent=97 // pred_region
          %s901 = smul.u32 %s32, %s31
          %s903 = ssub.s32 512, 512
          %904 = vsyncadd %s894, %s903
          %s905 = smul.addr %s30, 8
          %s906 = sadd.s32 %s901, %s905
          %s907 = smul.addr %s906, 128
          %s908 = scalar_lea.hbm %s11, %s907
          %s909 = sshll.u32 %s897, 4
          %s910 = int_to_ptr.vmem [resolvable:$true] %s909
          %915 = dma.vmem_to_hbm [thread:$0]  %s910, 512, %s908, %s894, 128, 256, 8
        $region126: #{tpu_custom_call.1} parent=97 // pred_fallthru
          _
      $region98: #{tpu_custom_call.1} parent=5 // pred_fallthru
        _
      %p916 = scmp.le.s32.totalorder 2, %s20
      // Predicated region
      $region127: #{tpu_custom_call.1} parent=5 // pred_check
        %p917 = pneg %p916
      $region128: #{tpu_custom_call.1} parent=5 // pred_check_branch
        %919 = sbr.rel (%p917) target = $region130
      $region129: #{tpu_custom_call.1} parent=5 // pred_region
        %s920 = ssub.s32 %s20, 2
        // Predicated region
        $region131: #{tpu_custom_call.1} parent=129 // pred_check
          %p921 = pneg %p310
        $region132: #{tpu_custom_call.1} parent=129 // pred_check_branch
          %923 = sbr.rel (%p921) target = $region134
        $region133: #{tpu_custom_call.1} parent=129 // pred_region
          %s924 = sand.u32 %s295, 1
          %s925 = scalar_lea.sflag [#allocation6], %s924
          %s926 = sand.u32 %s295, 1
          %s927 = smul.addr %s926, 32
          %s928 = scalar_lea.vmem [#allocation5], %s927
          %929 = dma.done %s925, 512
        $region134: #{tpu_custom_call.1} parent=129 // pred_fallthru
          _
      $region130: #{tpu_custom_call.1} parent=5 // pred_fallthru
        _
    $region6: #{tpu_custom_call.1} parent=1 // loop_footer
      %s24 = sadd.s32 1, %s20
    $region7: #{tpu_custom_call.1} parent=1 // loop_footer_branch
      %19 = sbr.rel target = $region3
    $region8: #{tpu_custom_call.1} parent=1 // loop_exit
      _
    %930 = vsyncpa [#allocation6], 1
    %s931 = scalar_lea.sflag [#allocation6], 1
    %932 = vsyncpa %s931, 1

</llo_original>
